<compile_context>
chip_gen: v5e
topology: v5e:2x2
jax: 0.10.0
libtpu: 0.0.40
codegen_flags: <defaults>
</compile_context>

<pallas_src>
import math
import functools

import jax
import jax.numpy as jnp
from jax.experimental import pallas as pl
from jax.experimental.pallas import tpu as pltpu

LANE = 128                 # lane width: hidden/output feature dims padded to multiples of this
_SUBLANE = 8               # batch rows padded to multiples of this (matmul M alignment)
_STEP_OVERHEAD_ROWS = 704  # ~0.35 us per grid step expressed in streamed-row equivalents


def _round_up(x, m):
    return ((x + m - 1) // m) * m


# ---------------------------------------------------------------------------
# Kernels
# ---------------------------------------------------------------------------

def _mlp_f32(x_ref, w1_ref, b1_ref, w2_ref, b2_ref, w3_ref, b3_ref):
    """Fused fc1+ReLU -> fc2+ReLU -> fc3 on one batch tile; returns f32 (tile_m, out_pad).

    Weights arrive already in the compute dtype (bf16 or f32); x is cast in-kernel so the
    wrapper never does an extra HBM round trip over x. Matmuls accumulate in f32 on the
    MXU; bias-add / ReLU run in f32 on the VPU (safe on v5e which has no bf16 VPU path).
    """
    x = x_ref[...].astype(w1_ref.dtype)
    h1 = jnp.dot(x, w1_ref[...], preferred_element_type=jnp.float32) + b1_ref[...]
    h1 = jnp.maximum(h1, 0.0).astype(w2_ref.dtype)
    h2 = jnp.dot(h1, w2_ref[...], preferred_element_type=jnp.float32) + b2_ref[...]
    h2 = jnp.maximum(h2, 0.0).astype(w3_ref.dtype)
    return jnp.dot(h2, w3_ref[...], preferred_element_type=jnp.float32) + b3_ref[...]


def qnetwork_kernel(x_ref, w1_ref, b1_ref, w2_ref, b2_ref, w3_ref, b3_ref, out_ref):
    """Q-values for one batch tile; lane-dense (128-wide) store in out_ref.dtype."""
    out = _mlp_f32(x_ref, w1_ref, b1_ref, w2_ref, b2_ref, w3_ref, b3_ref)
    out_ref[...] = out.astype(out_ref.dtype)


def qnetwork_greedy_kernel(x_ref, w1_ref, b1_ref, w2_ref, b2_ref, w3_ref, b3_ref,
                           q_ref, a_ref, *, action_size):
    """Fused forward + max/argmax over the (logical) action dimension."""
    out = _mlp_f32(x_ref, w1_ref, b1_ref, w2_ref, b2_ref, w3_ref, b3_ref)
    col = jax.lax.broadcasted_iota(jnp.int32, out.shape, 1)
    masked = jnp.where(col < action_size, out, -jnp.inf)           # hide padded columns
    q_max = jnp.max(masked, axis=-1, keepdims=True)
    act = jnp.min(jnp.where(masked == q_max, col, out.shape[-1]),  # first argmax
                  axis=-1, keepdims=True)
    q_ref[...] = q_max.astype(q_ref.dtype)
    a_ref[...] = act.astype(jnp.int32)


# ---------------------------------------------------------------------------
# Tiling / spec helpers
# ---------------------------------------------------------------------------

def _choose_batch_tiling(batch, tile_cap):
    """Pick (tile_m, padded_batch).

    Small batches: a single block, padded by at most 7 rows (multiple-of-8 alignment).
    Large batches: multiple-of-8 tile minimizing (padded rows + per-step overhead), so we
    never round the batch up by a whole 512/1024-row tile.
    """
    padded8 = _round_up(max(batch, 1), _SUBLANE)
    if padded8 <= tile_cap:
        return padded8, padded8
    best_tile, best_cost = _SUBLANE, None
    for t in range(_SUBLANE, tile_cap + 1, _SUBLANE):
        steps = -(-batch // t)
        cost = steps * t + steps * _STEP_OVERHEAD_ROWS
        if best_cost is None or cost <= best_cost:   # ties -> larger tile
            best_cost, best_tile = cost, t
    return best_tile, _round_up(batch, best_tile)


def _mlp_in_specs(tile_m, state, hid1, hid2, out_pad):
    return [
        pl.BlockSpec((tile_m, state), lambda i: (i, 0)),   # x tile (streams, double-buffered)
        pl.BlockSpec((state, hid1), lambda i: (0, 0)),     # w1 (VMEM-resident)
        pl.BlockSpec((1, hid1), lambda i: (0, 0)),         # b1 (f32)
        pl.BlockSpec((hid1, hid2), lambda i: (0, 0)),      # w2
        pl.BlockSpec((1, hid2), lambda i: (0, 0)),         # b2
        pl.BlockSpec((hid2, out_pad), lambda i: (0, 0)),   # w3
        pl.BlockSpec((1, out_pad), lambda i: (0, 0)),      # b3
    ]


def _cost(padded_batch, state, hid1, hid2, out_pad, x_dtype, w_dtype, out_bytes_per_row):
    flops = 2 * padded_batch * (state * hid1 + hid1 * hid2 + hid2 * out_pad)
    bytes_accessed = (
        padded_batch * state * jnp.dtype(x_dtype).itemsize
        + (state * hid1 + hid1 * hid2 + hid2 * out_pad) * jnp.dtype(w_dtype).itemsize
        + (hid1 + hid2 + out_pad) * 4
        + padded_batch * out_bytes_per_row
    )
    return pl.CostEstimate(flops=flops, transcendentals=0, bytes_accessed=bytes_accessed)


def _dim_semantics(use_core_parallel):
    # CORE_PARALLEL actually shards the batch grid axis across v7x's two TensorCores;
    # keep the portable default off so the same code runs on single-TC v5e/v6e.
    return (pltpu.CORE_PARALLEL,) if use_core_parallel else ("parallel",)


# ---------------------------------------------------------------------------
# Public entry points
# ---------------------------------------------------------------------------

def qnetwork_forward(x, prepared_params, action_size, *, out_dtype=None,
                     tile_cap=1024, use_core_parallel=False):
    """Fused MLP forward. Returns (batch, action_size) in out_dtype (default: weight dtype)."""
    w1, b1, w2, b2, w3, b3 = prepared_params
    batch, state = x.shape
    hid1, hid2, out_pad = w1.shape[1], w2.shape[1], w3.shape[1]
    if out_dtype is None:
        out_dtype = w1.dtype

    tile_m, padded_batch = _choose_batch_tiling(batch, tile_cap)
    if padded_batch != batch:
        x = jnp.pad(x, ((0, padded_batch - batch), (0, 0)))
    grid = (padded_batch // tile_m,)

    out = pl.pallas_call(
        qnetwork_kernel,
        out_shape=jax.ShapeDtypeStruct((padded_batch, out_pad), out_dtype),
        grid_spec=pltpu.PrefetchScalarGridSpec(
            num_scalar_prefetch=0,
            grid=grid,
            in_specs=_mlp_in_specs(tile_m, state, hid1, hid2, out_pad),
            out_specs=pl.BlockSpec((tile_m, out_pad), lambda i: (i, 0)),
        ),
        compiler_params=pltpu.CompilerParams(
            dimension_semantics=_dim_semantics(use_core_parallel)),
        cost_estimate=_cost(padded_batch, state, hid1, hid2, out_pad,
                            x.dtype, w1.dtype, out_pad * jnp.dtype(out_dtype).itemsize),
    )(x, w1, b1, w2, b2, w3, b3)

    # Slice away batch / lane padding (padded columns are exactly zero anyway).
    return out[:batch, :action_size]


def qnetwork_greedy_action(x, prepared_params, action_size, *, tile_cap=1024,
                           use_core_parallel=False):
    """Fused forward + greedy action selection.

    Returns (q_max (batch,) f32, action (batch,) int32) -- output stream is 8 bytes/row
    instead of 128 lanes/row, ideal for the inference/act() path.
    """
    w1, b1, w2, b2, w3, b3 = prepared_params
    batch, state = x.shape
    hid1, hid2, out_pad = w1.shape[1], w2.shape[1], w3.shape[1]

    tile_m, padded_batch = _choose_batch_tiling(batch, tile_cap)
    if padded_batch != batch:
        x = jnp.pad(x, ((0, padded_batch - batch), (0, 0)))
    grid = (padded_batch // tile_m,)

    kernel = functools.partial(qnetwork_greedy_kernel, action_size=action_size)

    q, a = pl.pallas_call(
        kernel,
        out_shape=(jax.ShapeDtypeStruct((padded_batch, 1), jnp.float32),
                   jax.ShapeDtypeStruct((padded_batch, 1), jnp.int32)),
        grid_spec=pltpu.PrefetchScalarGridSpec(
            num_scalar_prefetch=0,
            grid=grid,
            in_specs=_mlp_in_specs(tile_m, state, hid1, hid2, out_pad),
            out_specs=[pl.BlockSpec((tile_m, 1), lambda i: (i, 0)),
                       pl.BlockSpec((tile_m, 1), lambda i: (i, 0))],
        ),
        compiler_params=pltpu.CompilerParams(
            dimension_semantics=_dim_semantics(use_core_parallel)),
        cost_estimate=_cost(padded_batch, state, hid1, hid2, out_pad,
                            x.dtype, w1.dtype, 8),
    )(x, w1, b1, w2, b2, w3, b3)

    return q[:batch, 0], a[:batch, 0]


# ---------------------------------------------------------------------------
# Parameters
# ---------------------------------------------------------------------------

def init_qnetwork_params(key, state_size, action_size, fc1_unit=64, fc2_unit=64):
    """Deterministic init matching nn.Linear's default U(-1/sqrt(fan_in), 1/sqrt(fan_in)).

    Returns logical (unpadded) f32 params; weights are (in_features, out_features) so
    y = x @ W + b; biases are (1, out_features).
    """
    ks = jax.random.split(key, 6)

    def linear(kw, kb, fan_in, fan_out):
        bound = 1.0 / math.sqrt(fan_in)
        w = jax.random.uniform(kw, (fan_in, fan_out), jnp.float32, -bound, bound)
        b = jax.random.uniform(kb, (1, fan_out), jnp.float32, -bound, bound)
        return w, b

    w1, b1 = linear(ks[0], ks[1], state_size, fc1_unit)
    w2, b2 = linear(ks[2], ks[3], fc1_unit, fc2_unit)
    w3, b3 = linear(ks[4], ks[5], fc2_unit, action_size)
    return (w1, b1, w2, b2, w3, b3)


def prepare_qnetwork_params(params, *, compute_dtype=jnp.bfloat16, lane=LANE):
    """One-time param prep: zero-pad feature (lane) dims to `lane` multiples and cast the
    weights to the compute dtype. Biases stay f32 (bias-add / ReLU run in f32 after the
    f32-accumulating matmul).

    Zero padding is exact: padded hidden units compute ReLU(0) = 0 and padded output
    columns are 0, so slicing back recovers the logical result.
    """
    w1, b1, w2, b2, w3, b3 = params

    def pad2(a, rows, cols):
        return jnp.pad(a, ((0, rows - a.shape[0]), (0, cols - a.shape[1])))

    state = w1.shape[0]
    h1 = _round_up(w1.shape[1], lane)
    h2 = _round_up(w2.shape[1], lane)
    op = _round_up(w3.shape[1], lane)

    return (pad2(w1, state, h1).astype(compute_dtype),
            pad2(b1, 1, h1).astype(jnp.float32),
            pad2(w2, h1, h2).astype(compute_dtype),
            pad2(b2, 1, h2).astype(jnp.float32),
            pad2(w3, h2, op).astype(compute_dtype),
            pad2(b3, 1, op).astype(jnp.float32))


def qnetwork_reference(x, params):
    """Pure-JAX reference (unpadded params) for correctness check."""
    w1, b1, w2, b2, w3, b3 = params
    h1 = jnp.maximum(x @ w1 + b1, 0.0)
    h2 = jnp.maximum(h1 @ w2 + b2, 0.0)
    return h2 @ w3 + b3


if __name__ == "__main__":
    key = jax.random.PRNGKey(0)
    k_x, k_p, k_x2 = jax.random.split(key, 3)

    batch = 2
    state_size = 8
    action_size = 4

    x = jax.random.normal(k_x, (batch, state_size), jnp.float32)
    params = init_qnetwork_params(k_p, state_size, action_size, fc1_unit=64, fc2_unit=64)
    ref = qnetwork_reference(x, params)

    # One-time prep (pad + cast): f32 and default-bf16 variants.
    params_f32 = prepare_qnetwork_params(params, compute_dtype=jnp.float32)
    params_bf16 = prepare_qnetwork_params(params)  # bf16 compute by default

    # f32 path: tight match with the reference.
    out_f32 = qnetwork_forward(x, params_f32, action_size, out_dtype=jnp.float32)
    out_f32 = jax.block_until_ready(out_f32)
    assert out_f32.shape == (batch, action_size)
    assert jnp.allclose(out_f32, ref, atol=1e-5, rtol=1e-5)

    # Default bf16 compute + bf16 output (f32 accumulation): looser tolerance.
    out_bf16 = qnetwork_forward(x, params_bf16, action_size)
    out_bf16 = jax.block_until_ready(out_bf16)
    assert out_bf16.shape == (batch, action_size)
    assert out_bf16.dtype == jnp.bfloat16
    assert jnp.allclose(out_bf16.astype(jnp.float32), ref, atol=1e-1, rtol=1e-1)

    # Exercise the multi-tile (grid > 1) + batch-pad path with a tiny tile cap.
    batch2 = 20
    x2 = jax.random.normal(k_x2, (batch2, state_size), jnp.float32)
    ref2 = qnetwork_reference(x2, params)
    out2 = qnetwork_forward(x2, params_f32, action_size, out_dtype=jnp.float32, tile_cap=8)
    out2 = jax.block_until_ready(out2)
    assert out2.shape == (batch2, action_size)
    assert jnp.allclose(out2, ref2, atol=1e-5, rtol=1e-5)

    # Fused greedy-action epilogue (max/argmax over actions).
    q_max, act = qnetwork_greedy_action(x2, params_f32, action_size)
    q_max, act = jax.block_until_ready((q_max, act))
    assert q_max.shape == (batch2,) and act.shape == (batch2,)
    assert jnp.allclose(q_max, ref2.max(axis=-1), atol=1e-5, rtol=1e-5)
    assert jnp.array_equal(act, jnp.argmax(ref2, axis=-1).astype(jnp.int32))

    print("KERNEL_OK")
</pallas_src>

<mosaic_0001>
module attributes {stable_mosaic.version = 11 : i64} {
  func.func @qnetwork_kernel(%arg0: i32, %arg1: memref<8x8xf32, #tpu.memory_space<vmem>>, %arg2: memref<8x128xf32, #tpu.memory_space<vmem>>, %arg3: memref<1x128xf32, #tpu.memory_space<vmem>>, %arg4: memref<128x128xf32, #tpu.memory_space<vmem>>, %arg5: memref<1x128xf32, #tpu.memory_space<vmem>>, %arg6: memref<128x128xf32, #tpu.memory_space<vmem>>, %arg7: memref<1x128xf32, #tpu.memory_space<vmem>>, %arg8: memref<8x128xf32, #tpu.memory_space<vmem>>) attributes {dimension_semantics = [#tpu.dimension_semantics<parallel>], iteration_bounds = array<i64: 1>, scalar_prefetch = 0 : i64, scratch_operands = 0 : i64, tpu.core_type = #tpu.core_type<tc>, window_params = [{transform_indices = @transform_0, window_bounds = array<i64: 8, 8>}, {pipeline_mode = #tpu.pipeline_mode<synchronous>, transform_indices = @transform_1, window_bounds = array<i64: 8, 128>}, {pipeline_mode = #tpu.pipeline_mode<synchronous>, transform_indices = @transform_2, window_bounds = array<i64: 1, 128>}, {pipeline_mode = #tpu.pipeline_mode<synchronous>, transform_indices = @transform_3, window_bounds = array<i64: 128, 128>}, {pipeline_mode = #tpu.pipeline_mode<synchronous>, transform_indices = @transform_4, window_bounds = array<i64: 1, 128>}, {pipeline_mode = #tpu.pipeline_mode<synchronous>, transform_indices = @transform_5, window_bounds = array<i64: 128, 128>}, {pipeline_mode = #tpu.pipeline_mode<synchronous>, transform_indices = @transform_6, window_bounds = array<i64: 1, 128>}, {transform_indices = @transform_7, window_bounds = array<i64: 8, 128>}]} {
    %c0 = arith.constant 0 : index
    %c0_0 = arith.constant 0 : index
    %0 = vector.load %arg1[%c0, %c0_0] : memref<8x8xf32, #tpu.memory_space<vmem>>, vector<8x8xf32>
    %c0_1 = arith.constant 0 : index
    %c0_2 = arith.constant 0 : index
    %1 = vector.load %arg2[%c0_1, %c0_2] : memref<8x128xf32, #tpu.memory_space<vmem>>, vector<8x128xf32>
    %cst = arith.constant dense<0.000000e+00> : vector<8x128xf32>
    %2 = tpu.matmul %0, %1, %cst {dimension_numbers = #tpu.dot_dimension_numbers<[1], [0], [0], [1], [0, 0, 1, 1], [], []>} : vector<8x8xf32>, vector<8x128xf32>, vector<8x128xf32> -> vector<8x128xf32>
    %c0_3 = arith.constant 0 : index
    %c0_4 = arith.constant 0 : index
    %3 = vector.load %arg3[%c0_3, %c0_4] : memref<1x128xf32, #tpu.memory_space<vmem>>, vector<1x128xf32>
    %4 = vector.broadcast %3 : vector<1x128xf32> to vector<8x128xf32>
    %5 = arith.addf %2, %4 : vector<8x128xf32>
    %cst_5 = arith.constant 0.000000e+00 : f32
    %6 = vector.broadcast %cst_5 : f32 to vector<8x128xf32>
    %7 = arith.maximumf %5, %6 : vector<8x128xf32>
    %c0_6 = arith.constant 0 : index
    %c0_7 = arith.constant 0 : index
    %8 = vector.load %arg4[%c0_6, %c0_7] : memref<128x128xf32, #tpu.memory_space<vmem>>, vector<128x128xf32>
    %cst_8 = arith.constant dense<0.000000e+00> : vector<8x128xf32>
    %9 = tpu.matmul %7, %8, %cst_8 {dimension_numbers = #tpu.dot_dimension_numbers<[1], [0], [0], [1], [0, 0, 1, 1], [], []>} : vector<8x128xf32>, vector<128x128xf32>, vector<8x128xf32> -> vector<8x128xf32>
    %c0_9 = arith.constant 0 : index
    %c0_10 = arith.constant 0 : index
    %10 = vector.load %arg5[%c0_9, %c0_10] : memref<1x128xf32, #tpu.memory_space<vmem>>, vector<1x128xf32>
    %11 = vector.broadcast %10 : vector<1x128xf32> to vector<8x128xf32>
    %12 = arith.addf %9, %11 : vector<8x128xf32>
    %cst_11 = arith.constant 0.000000e+00 : f32
    %13 = vector.broadcast %cst_11 : f32 to vector<8x128xf32>
    %14 = arith.maximumf %12, %13 : vector<8x128xf32>
    %c0_12 = arith.constant 0 : index
    %c0_13 = arith.constant 0 : index
    %15 = vector.load %arg6[%c0_12, %c0_13] : memref<128x128xf32, #tpu.memory_space<vmem>>, vector<128x128xf32>
    %cst_14 = arith.constant dense<0.000000e+00> : vector<8x128xf32>
    %16 = tpu.matmul %14, %15, %cst_14 {dimension_numbers = #tpu.dot_dimension_numbers<[1], [0], [0], [1], [0, 0, 1, 1], [], []>} : vector<8x128xf32>, vector<128x128xf32>, vector<8x128xf32> -> vector<8x128xf32>
    %c0_15 = arith.constant 0 : index
    %c0_16 = arith.constant 0 : index
    %17 = vector.load %arg7[%c0_15, %c0_16] : memref<1x128xf32, #tpu.memory_space<vmem>>, vector<1x128xf32>
    %18 = vector.broadcast %17 : vector<1x128xf32> to vector<8x128xf32>
    %19 = arith.addf %16, %18 : vector<8x128xf32>
    %c0_17 = arith.constant 0 : index
    %c0_18 = arith.constant 0 : index
    %20 = vector.load %arg8[%c0_17, %c0_18] : memref<8x128xf32, #tpu.memory_space<vmem>>, vector<8x128xf32>
    tpu.vector_store %arg8[%c0_17, %c0_18], %19 {strides = array<i32>} : memref<8x128xf32, #tpu.memory_space<vmem>>, vector<8x128xf32>,
    return
  }
  func.func @transform_0(%arg0: i32) -> (i32, i32) {
    %c0_i32 = arith.constant 0 : i32
    %c0_i32_0 = arith.constant 0 : i32
    return %arg0, %c0_i32 : i32, i32
  }
  func.func @transform_1(%arg0: i32) -> (i32, i32) {
    %c0_i32 = arith.constant 0 : i32
    %c0_i32_0 = arith.constant 0 : i32
    %c0_i32_1 = arith.constant 0 : i32
    return %c0_i32, %c0_i32_0 : i32, i32
  }
  func.func @transform_2(%arg0: i32) -> (i32, i32) {
    %c0_i32 = arith.constant 0 : i32
    %c0_i32_0 = arith.constant 0 : i32
    %c0_i32_1 = arith.constant 0 : i32
    return %c0_i32, %c0_i32_0 : i32, i32
  }
  func.func @transform_3(%arg0: i32) -> (i32, i32) {
    %c0_i32 = arith.constant 0 : i32
    %c0_i32_0 = arith.constant 0 : i32
    %c0_i32_1 = arith.constant 0 : i32
    return %c0_i32, %c0_i32_0 : i32, i32
  }
  func.func @transform_4(%arg0: i32) -> (i32, i32) {
    %c0_i32 = arith.constant 0 : i32
    %c0_i32_0 = arith.constant 0 : i32
    %c0_i32_1 = arith.constant 0 : i32
    return %c0_i32, %c0_i32_0 : i32, i32
  }
  func.func @transform_5(%arg0: i32) -> (i32, i32) {
    %c0_i32 = arith.constant 0 : i32
    %c0_i32_0 = arith.constant 0 : i32
    %c0_i32_1 = arith.constant 0 : i32
    return %c0_i32, %c0_i32_0 : i32, i32
  }
  func.func @transform_6(%arg0: i32) -> (i32, i32) {
    %c0_i32 = arith.constant 0 : i32
    %c0_i32_0 = arith.constant 0 : i32
    %c0_i32_1 = arith.constant 0 : i32
    return %c0_i32, %c0_i32_0 : i32, i32
  }
  func.func @transform_7(%arg0: i32) -> (i32, i32) {
    %c0_i32 = arith.constant 0 : i32
    %c0_i32_0 = arith.constant 0 : i32
    return %arg0, %c0_i32 : i32, i32
  }
}

</mosaic_0001>

<llo_original>
// kernel: tpu_custom_call.1
$region0: #{tpu_custom_call.1}
  #allocation0 [shape = 'u32[]', space=smem, size = 0x4, offset = 0x4, fixed_abs, tag = 'smem constant byte address 0x4 - core index']
  #allocation1 [shape = 'u32[72,128]{1,0:T(1,128)}', space=vmem, size = 0x9000, scoped, tag = 'internal scratch']
  %s0 = inlined_call_operand.hbm [shape: f32[8,8], index: 0, kind: input, shape index: {}]
  %s1 = inlined_call_operand.hbm [shape: f32[8,128], index: 1, kind: input, shape index: {}]
  %s2 = inlined_call_operand.vmem [shape: f32[1,128], index: 2, kind: input, shape index: {}]
  %s3 = inlined_call_operand.hbm [shape: f32[128,128], index: 3, kind: input, shape index: {}]
  %s4 = inlined_call_operand.vmem [shape: f32[1,128], index: 4, kind: input, shape index: {}]
  %s5 = inlined_call_operand.hbm [shape: f32[128,128], index: 5, kind: input, shape index: {}]
  %s6 = inlined_call_operand.vmem [shape: f32[1,128], index: 6, kind: input, shape index: {}]
  %s7 = inlined_call_operand.hbm [shape: f32[8,128], index: 7, kind: output, shape index: {}]
  %s8 = sld [smem:[#allocation0]]
  $region54: #{tpu_custom_call.1} parent=0
    _
  %s10 = ssub.s32 1, %s8
  %s11 = scalar_select 0, %s10, %s8
  $region1: #{tpu_custom_call.1} parent=0
    #allocation2 [shape = 'u8[4096]{0}', space=vmem, size = 0x1000, scoped, tag = 'input window, operand 0, single buffered']
    #allocation3 [shape = 's32[1]{0}', space=sflag, size = 0x4, scoped, tag = 'scoped memory for tpu_custom_call.1']
    #allocation4 [shape = 's32[1]{0}', space=sflag, size = 0x4, scoped, tag = 'scoped memory for tpu_custom_call.1']
    #allocation5 [shape = 'u8[4096]{0}', space=vmem, size = 0x1000, scoped, tag = 'input window, operand 1, single buffered']
    #allocation6 [shape = 's32[1]{0}', space=sflag, size = 0x4, scoped, tag = 'scoped memory for tpu_custom_call.1']
    #allocation7 [shape = 'u8[65536]{0}', space=vmem, size = 0x10000, scoped, tag = 'input window, operand 3, single buffered']
    #allocation8 [shape = 'u8[65536]{0}', space=vmem, size = 0x10000, scoped, tag = 'input window, operand 5, single buffered']
    #allocation9 [shape = 's32[1]{0}', space=sflag, size = 0x4, scoped, tag = 'scoped memory for tpu_custom_call.1']
    #allocation10 [shape = 'u8[4096]{0}', space=vmem, size = 0x1000, scoped, tag = 'output window, operand 0, single buffered']
    %12 = vsyncpa [#allocation3], 0
    %13 = vsyncpa [#allocation6], 0
    %14 = vsyncpa [#allocation9], 0
    %15 = vsyncpa [#allocation4], 0
    // Predicated region
    $region2: #{tpu_custom_call.1} parent=1 // pred_check
      _
    $region3: #{tpu_custom_call.1} parent=1 // pred_check_branch
      %17 = sbr.rel (0) target = $region5
    $region4: #{tpu_custom_call.1} parent=1 // pred_region
      %19 = vsyncadd [#allocation3], 0
      %s21 = sshll.u32 %s0, 4
      %s22 = int_to_ptr.hbm [resolvable:$true] %s21
      %s23 = sshll.u32 [#allocation2], 4
      %s24 = int_to_ptr.vmem [resolvable:$true] %s23
      %26 = dma.hbm_to_vmem [thread:$0]  %s22, 128, %s24, [#allocation3]
    $region5: #{tpu_custom_call.1} parent=1 // pred_fallthru
      _
    // Predicated region
    $region6: #{tpu_custom_call.1} parent=1 // pred_check
      _
    $region7: #{tpu_custom_call.1} parent=1 // pred_check_branch
      %28 = sbr.rel (0) target = $region9
    $region8: #{tpu_custom_call.1} parent=1 // pred_region
      %30 = vsyncadd [#allocation6], 0
      %s32 = sshll.u32 %s1, 4
      %s33 = int_to_ptr.hbm [resolvable:$true] %s32
      %s34 = sshll.u32 [#allocation5], 4
      %s35 = int_to_ptr.vmem [resolvable:$true] %s34
      %37 = dma.hbm_to_vmem [thread:$0]  %s33, 128, %s35, [#allocation6]
    $region9: #{tpu_custom_call.1} parent=1 // pred_fallthru
      _
    // Predicated region
    $region10: #{tpu_custom_call.1} parent=1 // pred_check
      _
    $region11: #{tpu_custom_call.1} parent=1 // pred_check_branch
      %39 = sbr.rel (0) target = $region13
    $region12: #{tpu_custom_call.1} parent=1 // pred_region
      _
    $region13: #{tpu_custom_call.1} parent=1 // pred_fallthru
      _
    // Predicated region
    $region14: #{tpu_custom_call.1} parent=1 // pred_check
      _
    $region15: #{tpu_custom_call.1} parent=1 // pred_check_branch
      %41 = sbr.rel (0) target = $region17
    $region16: #{tpu_custom_call.1} parent=1 // pred_region
      %43 = vsyncadd [#allocation6], 0
      %s44 = sshll.u32 %s3, 4
      %s45 = int_to_ptr.hbm [resolvable:$true] %s44
      %s46 = sshll.u32 [#allocation7], 4
      %s47 = int_to_ptr.vmem [resolvable:$true] %s46
      %52 = dma.hbm_to_vmem [thread:$0]  %s45, 2048, %s47, [#allocation6], 128, 128, 8
    $region17: #{tpu_custom_call.1} parent=1 // pred_fallthru
      _
    // Predicated region
    $region18: #{tpu_custom_call.1} parent=1 // pred_check
      _
    $region19: #{tpu_custom_call.1} parent=1 // pred_check_branch
      %54 = sbr.rel (0) target = $region21
    $region20: #{tpu_custom_call.1} parent=1 // pred_region
      _
    $region21: #{tpu_custom_call.1} parent=1 // pred_fallthru
      _
    // Predicated region
    $region22: #{tpu_custom_call.1} parent=1 // pred_check
      _
    $region23: #{tpu_custom_call.1} parent=1 // pred_check_branch
      %56 = sbr.rel (0) target = $region25
    $region24: #{tpu_custom_call.1} parent=1 // pred_region
      %58 = vsyncadd [#allocation9], 0
      %s59 = sshll.u32 %s5, 4
      %s60 = int_to_ptr.hbm [resolvable:$true] %s59
      %s61 = sshll.u32 [#allocation8], 4
      %s62 = int_to_ptr.vmem [resolvable:$true] %s61
      %67 = dma.hbm_to_vmem [thread:$0]  %s60, 2048, %s62, [#allocation9], 128, 128, 8
    $region25: #{tpu_custom_call.1} parent=1 // pred_fallthru
      _
    // Predicated region
    $region26: #{tpu_custom_call.1} parent=1 // pred_check
      _
    $region27: #{tpu_custom_call.1} parent=1 // pred_check_branch
      %69 = sbr.rel (0) target = $region29
    $region28: #{tpu_custom_call.1} parent=1 // pred_region
      _
    $region29: #{tpu_custom_call.1} parent=1 // pred_fallthru
      _
    // Predicated region
    $region30: #{tpu_custom_call.1} parent=1 // pred_check
      _
    $region31: #{tpu_custom_call.1} parent=1 // pred_check_branch
      %71 = sbr.rel (0) target = $region33
    $region32: #{tpu_custom_call.1} parent=1 // pred_region
      %73 = dma.done [#allocation3], 128
    $region33: #{tpu_custom_call.1} parent=1 // pred_fallthru
      _
    // Predicated region
    $region34: #{tpu_custom_call.1} parent=1 // pred_check
      _
    $region35: #{tpu_custom_call.1} parent=1 // pred_check_branch
      %75 = sbr.rel (0) target = $region37
    $region36: #{tpu_custom_call.1} parent=1 // pred_region
      %77 = dma.done [#allocation6], 128
    $region37: #{tpu_custom_call.1} parent=1 // pred_fallthru
      _
    // Predicated region
    $region38: #{tpu_custom_call.1} parent=1 // pred_check
      _
    $region39: #{tpu_custom_call.1} parent=1 // pred_check_branch
      %79 = sbr.rel (0) target = $region41
    $region40: #{tpu_custom_call.1} parent=1 // pred_region
      %81 = dma.done [#allocation6], 2048
    $region41: #{tpu_custom_call.1} parent=1 // pred_fallthru
      _
    // Predicated region
    $region42: #{tpu_custom_call.1} parent=1 // pred_check
      _
    $region43: #{tpu_custom_call.1} parent=1 // pred_check_branch
      %83 = sbr.rel (0) target = $region45
    $region44: #{tpu_custom_call.1} parent=1 // pred_region
      %85 = dma.done [#allocation9], 2048
    $region45: #{tpu_custom_call.1} parent=1 // pred_fallthru
      _
    %v86 = vld [vmem:[#allocation2] sm:$0xff]
    %v87 = vld [vmem:[#allocation5] sm:$0xff]
    %v88 = vld [vmem:[%s2] sm:$0x1]
    %v90 = vperm.slane %v88, 0
    %vm92 = vcmask 64512
    %v94 = vsel %vm92, %v86, 0
    %96 = vmatpush.msra.mxu0 0.0
    %97 = vmatpush.msra.mxu0 0.0
    %98 = vmatpush.msra.mxu0 0.0
    %99 = vmatpush.msra.mxu0 0.0
    %100 = vmatpush.msra.mxu0 0.0
    %101 = vmatpush.msra.mxu0 0.0
    %102 = vmatpush.msra.mxu0 0.0
    %103 = vmatpush.msra.mxu0 0.0
    %104 = vmatpush.msra.mxu0 0.0
    %105 = vmatpush.msra.mxu0 0.0
    %106 = vmatpush.msra.mxu0 0.0
    %107 = vmatpush.msra.mxu0 0.0
    %108 = vmatpush.msra.mxu0 0.0
    %109 = vmatpush.msra.mxu0 0.0
    %110 = vmatpush.msra.mxu0 0.0
    %111 = vmatpush.msra.mxu0 %v87
    %112 = vmatmul.f32.gmra.mxu0 %v94
    %v113 = vpop.f32.mrf.mxu0
    %v114 = vadd.f32 %v90, %v113
    %115 = vdwg.mxu0
    %v116 = vmax.f32 %v114, 0.0
    %v117 = vld [vmem:[#allocation7] sm:$0xff]
    %v118 = vld [vmem:[#allocation7 + $0x8] sm:$0xff]
    %v119 = vld [vmem:[#allocation7 + $0x10] sm:$0xff]
    %v120 = vld [vmem:[#allocation7 + $0x18] sm:$0xff]
    %v121 = vld [vmem:[#allocation7 + $0x20] sm:$0xff]
    %v122 = vld [vmem:[#allocation7 + $0x28] sm:$0xff]
    %v123 = vld [vmem:[#allocation7 + $0x30] sm:$0xff]
    %v124 = vld [vmem:[#allocation7 + $0x38] sm:$0xff]
    %v125 = vld [vmem:[#allocation7 + $0x40] sm:$0xff]
    %v126 = vld [vmem:[#allocation7 + $0x48] sm:$0xff]
    %v127 = vld [vmem:[#allocation7 + $0x50] sm:$0xff]
    %v128 = vld [vmem:[#allocation7 + $0x58] sm:$0xff]
    %v129 = vld [vmem:[#allocation7 + $0x60] sm:$0xff]
    %v130 = vld [vmem:[#allocation7 + $0x68] sm:$0xff]
    %v131 = vld [vmem:[#allocation7 + $0x70] sm:$0xff]
    %v132 = vld [vmem:[#allocation7 + $0x78] sm:$0xff]
    %v133 = vld [vmem:[%s4] sm:$0x1]
    %v135 = vperm.slane %v133, 0
    %137 = vmatpush.msra.mxu0 %v132
    %138 = vmatpush.msra.mxu0 %v131
    %139 = vmatpush.msra.mxu0 %v130
    %140 = vmatpush.msra.mxu0 %v129
    %141 = vmatpush.msra.mxu0 %v128
    %142 = vmatpush.msra.mxu0 %v127
    %143 = vmatpush.msra.mxu0 %v126
    %144 = vmatpush.msra.mxu0 %v125
    %145 = vmatpush.msra.mxu0 %v124
    %146 = vmatpush.msra.mxu0 %v123
    %147 = vmatpush.msra.mxu0 %v122
    %148 = vmatpush.msra.mxu0 %v121
    %149 = vmatpush.msra.mxu0 %v120
    %150 = vmatpush.msra.mxu0 %v119
    %151 = vmatpush.msra.mxu0 %v118
    %152 = vmatpush.msra.mxu0 %v117
    %153 = vmatmul.f32.gmra.mxu0 %v116
    %v154 = vpop.f32.mrf.mxu0
    %v155 = vadd.f32 %v135, %v154
    %156 = vdwg.mxu0
    %v157 = vmax.f32 %v155, 0.0
    %v158 = vld [vmem:[#allocation8] sm:$0xff]
    %v159 = vld [vmem:[#allocation8 + $0x8] sm:$0xff]
    %v160 = vld [vmem:[#allocation8 + $0x10] sm:$0xff]
    %v161 = vld [vmem:[#allocation8 + $0x18] sm:$0xff]
    %v162 = vld [vmem:[#allocation8 + $0x20] sm:$0xff]
    %v163 = vld [vmem:[#allocation8 + $0x28] sm:$0xff]
    %v164 = vld [vmem:[#allocation8 + $0x30] sm:$0xff]
    %v165 = vld [vmem:[#allocation8 + $0x38] sm:$0xff]
    %v166 = vld [vmem:[#allocation8 + $0x40] sm:$0xff]
    %v167 = vld [vmem:[#allocation8 + $0x48] sm:$0xff]
    %v168 = vld [vmem:[#allocation8 + $0x50] sm:$0xff]
    %v169 = vld [vmem:[#allocation8 + $0x58] sm:$0xff]
    %v170 = vld [vmem:[#allocation8 + $0x60] sm:$0xff]
    %v171 = vld [vmem:[#allocation8 + $0x68] sm:$0xff]
    %v172 = vld [vmem:[#allocation8 + $0x70] sm:$0xff]
    %v173 = vld [vmem:[#allocation8 + $0x78] sm:$0xff]
    %v174 = vld [vmem:[%s6] sm:$0x1]
    %v176 = vperm.slane %v174, 0
    %178 = vmatpush.msra.mxu0 %v173
    %179 = vmatpush.msra.mxu0 %v172
    %180 = vmatpush.msra.mxu0 %v171
    %181 = vmatpush.msra.mxu0 %v170
    %182 = vmatpush.msra.mxu0 %v169
    %183 = vmatpush.msra.mxu0 %v168
    %184 = vmatpush.msra.mxu0 %v167
    %185 = vmatpush.msra.mxu0 %v166
    %186 = vmatpush.msra.mxu0 %v165
    %187 = vmatpush.msra.mxu0 %v164
    %188 = vmatpush.msra.mxu0 %v163
    %189 = vmatpush.msra.mxu0 %v162
    %190 = vmatpush.msra.mxu0 %v161
    %191 = vmatpush.msra.mxu0 %v160
    %192 = vmatpush.msra.mxu0 %v159
    %193 = vmatpush.msra.mxu0 %v158
    %194 = vmatmul.f32.gmra.mxu0 %v157
    %v195 = vpop.f32.mrf.mxu0
    %v196 = vadd.f32 %v176, %v195
    %197 = vdwg.mxu0
    %198 = vst [vmem:[#allocation10] sm:$0xff] %v196
    // Predicated region
    $region46: #{tpu_custom_call.1} parent=1 // pred_check
      _
    $region47: #{tpu_custom_call.1} parent=1 // pred_check_branch
      %200 = sbr.rel (0) target = $region49
    $region48: #{tpu_custom_call.1} parent=1 // pred_region
      %202 = vsyncadd [#allocation4], 0
      %s204 = sshll.u32 [#allocation10], 4
      %s205 = int_to_ptr.vmem [resolvable:$true] %s204
      %s206 = sshll.u32 %s7, 4
      %s207 = int_to_ptr.hbm [resolvable:$true] %s206
      %209 = dma.vmem_to_hbm [thread:$0]  %s205, 128, %s207, [#allocation4]
    $region49: #{tpu_custom_call.1} parent=1 // pred_fallthru
      _
    // Predicated region
    $region50: #{tpu_custom_call.1} parent=1 // pred_check
      _
    $region51: #{tpu_custom_call.1} parent=1 // pred_check_branch
      %211 = sbr.rel (0) target = $region53
    $region52: #{tpu_custom_call.1} parent=1 // pred_region
      %213 = dma.done [#allocation4], 128
    $region53: #{tpu_custom_call.1} parent=1 // pred_fallthru
      _
    %214 = vsyncpa [#allocation3], 1
    %215 = vsyncpa [#allocation6], 1
    %216 = vsyncpa [#allocation9], 1
    %217 = vsyncpa [#allocation4], 1

</llo_original>
